<compile_context>
chip_gen: v7x
topology: tpu7x:2x2x1
jax: 0.10.0
libtpu: 0.0.40
codegen_flags: <defaults>
</compile_context>

<pallas_src>
import jax
import jax.numpy as jnp
from jax.experimental import pallas as pl
from jax.experimental.pallas import tpu as pltpu

# Module hyper-parameters (from the PyTorch script)
INPUT_SIZE = 2
HIDDEN_SIZE_1 = 16
HIDDEN_SIZE_2 = 8
OUTPUT_SIZE = 1

# Packed-parameter slab layout (f32, shape (SLAB_ROWS, SLAB_COLS)):
#   rows [0, H1)          cols [0, IN)   : W1   (H1, IN)     (PyTorch (out,in))
#   rows [0, H1)          col  IN        : b1   (H1,)
#   rows [H1, H1+H2)      cols [0, H1)   : W2   (H2, H1)
#   rows [H1, H1+H2)      col  H1        : b2   (H2,)
#   rows [H1+H2, H1+2*H2) col  0         : W3^T (H2,)
#   row  H1+H2            col  1         : b3   ()
_R2 = HIDDEN_SIZE_1                    # 16
_R3 = HIDDEN_SIZE_1 + HIDDEN_SIZE_2    # 24
SLAB_ROWS = 32                         # >= H1 + 2*H2, multiple of 8
SLAB_COLS = 128                        # one lane tile


def _round_up(n, m):
    return ((n + m - 1) // m) * m


def _default_block_batch():
    """Generation-aware batch-tile ceiling.

    v5e has a single vector-store slot per bundle, so large tiles whose
    (16 x tb) / (8 x tb) intermediates spill saturate the store slot first;
    keep its tile smaller.  v6e/v7x take the bigger tile.
    """
    try:
        kind = jax.devices()[0].device_kind.lower()
    except Exception:
        kind = ""
    return 8192 if "v5" in kind else 16384


def mlp_kernel(x_ref, p_ref, o_ref):
    """fc1 -> ReLU -> fc2 -> ReLU -> fc3 with batch on the lane axis."""
    p = p_ref[...]                      # (32, 128) f32 slab (4 vregs)
    x = x_ref[...]                      # (IN, TB): batch lane-dense

    w1 = p[0:_R2, 0:INPUT_SIZE]                         # (16, 2)
    b1 = p[0:_R2, INPUT_SIZE:INPUT_SIZE + 1]            # (16, 1)
    w2 = p[_R2:_R3, 0:HIDDEN_SIZE_1]                    # (8, 16)
    b2 = p[_R2:_R3, HIDDEN_SIZE_1:HIDDEN_SIZE_1 + 1]    # (8, 1)
    w3t = p[_R3:_R3 + HIDDEN_SIZE_2, 0:1]               # (8, 1)
    b3 = p[_R3:_R3 + 1, 1:2]                            # (1, 1)

    # fc1: 2 -> 16 on the MXU (vex slot is otherwise idle; frees the VALU).
    h1 = jnp.dot(w1, x, preferred_element_type=jnp.float32) + b1   # (16, TB)
    h1 = jnp.maximum(h1, 0.0)

    # fc2: 16 -> 8 on the MXU, f32 accumulate.
    h2 = jnp.dot(w2, h1, preferred_element_type=jnp.float32) + b2  # (8, TB)
    h2 = jnp.maximum(h2, 0.0)

    # fc3: N=1 -> broadcast-multiply + sublane reduce (XLU) instead of MXU.
    out = jnp.sum(w3t * h2, axis=0, keepdims=True) + b3            # (1, TB)
    o_ref[...] = out.astype(o_ref.dtype)


def pack_params(params):
    """Pack PyTorch-layout params (w: (out,in), b: (out,)) into one VMEM slab."""
    slab = jnp.zeros((SLAB_ROWS, SLAB_COLS), jnp.float32)
    slab = slab.at[0:_R2, 0:INPUT_SIZE].set(params["w1"].astype(jnp.float32))
    slab = slab.at[0:_R2, INPUT_SIZE].set(params["b1"].astype(jnp.float32))
    slab = slab.at[_R2:_R3, 0:HIDDEN_SIZE_1].set(params["w2"].astype(jnp.float32))
    slab = slab.at[_R2:_R3, HIDDEN_SIZE_1].set(params["b2"].astype(jnp.float32))
    slab = slab.at[_R3:_R3 + HIDDEN_SIZE_2, 0].set(
        params["w3"][0, :].astype(jnp.float32))
    slab = slab.at[_R3, 1].set(params["b3"][0].astype(jnp.float32))
    return slab


def neural_network_forward_lanes(x_t, params, *, block_batch=None):
    """Forward pass with x already feature-major: x_t is (INPUT_SIZE, batch).

    Producers that can emit this layout skip the wrapper-side transpose pass
    (which would otherwise be a separate un-hidden HBM read+write comparable
    to the kernel's own traffic).  Returns (OUTPUT_SIZE, batch).
    """
    if block_batch is None:
        block_batch = _default_block_batch()
    assert block_batch % 128 == 0
    batch = x_t.shape[1]

    padded128 = _round_up(batch, 128)
    tb = min(block_batch, padded128)
    # Keep >= 2 grid steps whenever the batch allows it so the "parallel" axis
    # can shard across v7x's two TensorCores (no effect on 1-TC v5e/v6e).
    if padded128 >= 2 * 128:
        tb = min(tb, max(128, (padded128 // 2) // 128 * 128))
    padded = _round_up(batch, tb)

    x_t = x_t.astype(jnp.float32)
    if padded != batch:
        x_t = jnp.pad(x_t, ((0, 0), (0, padded - batch)))

    slab = pack_params(params)

    # Modest explicit VMEM budget: double-buffered x/out tiles + resident slab
    # + headroom for the (16+8, tb) f32 intermediates / spill scratch.
    need = 4 * (2 * (INPUT_SIZE + OUTPUT_SIZE) * tb
                + 2 * SLAB_ROWS * SLAB_COLS
                + (HIDDEN_SIZE_1 + HIDDEN_SIZE_2 + 4) * tb)
    vmem_limit = int(min(32 << 20, max(16 << 20, 2 * need)))

    out_t = pl.pallas_call(
        mlp_kernel,
        out_shape=jax.ShapeDtypeStruct((OUTPUT_SIZE, padded), jnp.float32),
        grid=(padded // tb,),
        in_specs=[
            pl.BlockSpec((INPUT_SIZE, tb), lambda i: (0, i)),
            # Constant index_map -> slab stays VMEM-resident across the grid.
            pl.BlockSpec((SLAB_ROWS, SLAB_COLS), lambda i: (0, 0)),
        ],
        out_specs=pl.BlockSpec((OUTPUT_SIZE, tb), lambda i: (0, i)),
        compiler_params=pltpu.CompilerParams(
            dimension_semantics=("parallel",),
            vmem_limit_bytes=vmem_limit),
    )(x_t, slab)

    return out_t[:, :batch]


def neural_network_forward(x, params, *, block_batch=None):
    """Pallas equivalent of NeuralNetwork.forward.

    x: (batch, INPUT_SIZE) float32 (PyTorch layout)
    params: dict of PyTorch-layout weights/biases (w: (out,in), b: (out,)).
    """
    # TODO(synk): producers that can emit x feature-major should call
    # neural_network_forward_lanes directly and skip this transpose pass.
    batch = x.shape[0]
    out_t = neural_network_forward_lanes(x.T, params, block_batch=block_batch)
    # (1, batch) -> (batch, 1): leading dim is 1, so this reshape is free.
    return out_t.reshape(batch, OUTPUT_SIZE)


def init_params(key):
    """PyTorch nn.Linear-style init: U(-1/sqrt(fan_in), +1/sqrt(fan_in)),
    weights stored in PyTorch's native (out_features, in_features) layout."""
    def linear(k, fan_in, fan_out):
        kw, kb = jax.random.split(k)
        bound = 1.0 / jnp.sqrt(jnp.float32(fan_in))
        w = jax.random.uniform(kw, (fan_out, fan_in), jnp.float32, -bound, bound)
        b = jax.random.uniform(kb, (fan_out,), jnp.float32, -bound, bound)
        return w, b

    k1, k2, k3 = jax.random.split(key, 3)
    w1, b1 = linear(k1, INPUT_SIZE, HIDDEN_SIZE_1)
    w2, b2 = linear(k2, HIDDEN_SIZE_1, HIDDEN_SIZE_2)
    w3, b3 = linear(k3, HIDDEN_SIZE_2, OUTPUT_SIZE)
    return {"w1": w1, "b1": b1, "w2": w2, "b2": b2, "w3": w3, "b3": b3}


def reference_forward(x, p):
    h1 = jnp.maximum(x @ p["w1"].T + p["b1"], 0.0)
    h2 = jnp.maximum(h1 @ p["w2"].T + p["b2"], 0.0)
    return h2 @ p["w3"].T + p["b3"]


if __name__ == "__main__":
    key = jax.random.PRNGKey(0)
    k_params, k_x1, k_x2, k_x3 = jax.random.split(key, 4)
    params = init_params(k_params)

    # Small case (batch=8, the module's toy scale): single 128-lane grid step.
    x_small = jax.random.normal(k_x1, (8, INPUT_SIZE), jnp.float32)
    out_small = jax.block_until_ready(neural_network_forward(x_small, params))
    ref_small = reference_forward(x_small, params)
    assert out_small.shape == (8, OUTPUT_SIZE), out_small.shape
    assert jnp.allclose(out_small, ref_small, atol=1e-5, rtol=1e-5), "mismatch (small)"

    # Mid case exercises padding + the >=2-grid-step (two-TC) path.
    x_mid = jax.random.normal(k_x2, (1000, INPUT_SIZE), jnp.float32)
    out_mid = jax.block_until_ready(neural_network_forward(x_mid, params))
    ref_mid = reference_forward(x_mid, params)
    assert out_mid.shape == (1000, OUTPUT_SIZE), out_mid.shape
    assert jnp.allclose(out_mid, ref_mid, atol=1e-5, rtol=1e-5), "mismatch (mid)"

    # Large case exercises the full-size (8K/16K-lane) batch tile.
    x_big = jax.random.normal(k_x3, (40000, INPUT_SIZE), jnp.float32)
    out_big = jax.block_until_ready(neural_network_forward(x_big, params))
    ref_big = reference_forward(x_big, params)
    assert out_big.shape == (40000, OUTPUT_SIZE), out_big.shape
    assert jnp.allclose(out_big, ref_big, atol=1e-5, rtol=1e-5), "mismatch (big)"

    print("KERNEL_OK")
</pallas_src>

<mosaic_0001>
module attributes {stable_mosaic.version = 11 : i64} {
  func.func @mlp_kernel(%arg0: i32, %arg1: memref<2x128xf32, #tpu.memory_space<vmem>>, %arg2: memref<32x128xf32, #tpu.memory_space<vmem>>, %arg3: memref<1x128xf32, #tpu.memory_space<vmem>>) attributes {dimension_semantics = [#tpu.dimension_semantics<parallel>], iteration_bounds = array<i64: 1>, scalar_prefetch = 0 : i64, scratch_operands = 0 : i64, tpu.core_type = #tpu.core_type<tc>, window_params = [{transform_indices = @transform_0, window_bounds = array<i64: 2, 128>}, {pipeline_mode = #tpu.pipeline_mode<synchronous>, transform_indices = @transform_1, window_bounds = array<i64: 32, 128>}, {transform_indices = @transform_2, window_bounds = array<i64: 1, 128>}]} {
    %c0 = arith.constant 0 : index
    %c0_0 = arith.constant 0 : index
    %0 = vector.load %arg2[%c0, %c0_0] : memref<32x128xf32, #tpu.memory_space<vmem>>, vector<32x128xf32>
    %c0_1 = arith.constant 0 : index
    %c0_2 = arith.constant 0 : index
    %1 = vector.load %arg1[%c0_1, %c0_2] : memref<2x128xf32, #tpu.memory_space<vmem>>, vector<2x128xf32>
    %2 = vector.extract_strided_slice %0 {offsets = [0, 0], sizes = [16, 2], strides = [1, 1]} : vector<32x128xf32> to vector<16x2xf32>
    %3 = vector.extract_strided_slice %0 {offsets = [0, 2], sizes = [16, 1], strides = [1, 1]} : vector<32x128xf32> to vector<16x1xf32>
    %4 = vector.extract_strided_slice %0 {offsets = [16, 0], sizes = [8, 16], strides = [1, 1]} : vector<32x128xf32> to vector<8x16xf32>
    %5 = vector.extract_strided_slice %0 {offsets = [16, 16], sizes = [8, 1], strides = [1, 1]} : vector<32x128xf32> to vector<8x1xf32>
    %6 = vector.extract_strided_slice %0 {offsets = [24, 0], sizes = [8, 1], strides = [1, 1]} : vector<32x128xf32> to vector<8x1xf32>
    %7 = vector.extract_strided_slice %0 {offsets = [24, 1], sizes = [1, 1], strides = [1, 1]} : vector<32x128xf32> to vector<1x1xf32>
    %cst = arith.constant dense<0.000000e+00> : vector<16x128xf32>
    %8 = tpu.matmul %2, %1, %cst {dimension_numbers = #tpu.dot_dimension_numbers<[1], [0], [0], [1], [0, 0, 1, 1], [], []>} : vector<16x2xf32>, vector<2x128xf32>, vector<16x128xf32> -> vector<16x128xf32>
    %9 = vector.broadcast %3 : vector<16x1xf32> to vector<16x128xf32>
    %10 = arith.addf %8, %9 : vector<16x128xf32>
    %cst_3 = arith.constant 0.000000e+00 : f32
    %11 = vector.broadcast %cst_3 : f32 to vector<16x128xf32>
    %12 = arith.maximumf %10, %11 : vector<16x128xf32>
    %cst_4 = arith.constant dense<0.000000e+00> : vector<8x128xf32>
    %13 = tpu.matmul %4, %12, %cst_4 {dimension_numbers = #tpu.dot_dimension_numbers<[1], [0], [0], [1], [0, 0, 1, 1], [], []>} : vector<8x16xf32>, vector<16x128xf32>, vector<8x128xf32> -> vector<8x128xf32>
    %14 = vector.broadcast %5 : vector<8x1xf32> to vector<8x128xf32>
    %15 = arith.addf %13, %14 : vector<8x128xf32>
    %cst_5 = arith.constant 0.000000e+00 : f32
    %16 = vector.broadcast %cst_5 : f32 to vector<8x128xf32>
    %17 = arith.maximumf %15, %16 : vector<8x128xf32>
    %18 = vector.broadcast %6 : vector<8x1xf32> to vector<8x128xf32>
    %19 = arith.mulf %18, %17 : vector<8x128xf32>
    %cst_6 = arith.constant dense<0.000000e+00> : vector<128xf32>
    %20 = vector.multi_reduction <add>, %19, %cst_6 [0] : vector<8x128xf32> to vector<128xf32>
    %21 = vector.shape_cast %20 : vector<128xf32> to vector<1x128xf32>
    %22 = vector.broadcast %7 : vector<1x1xf32> to vector<1x128xf32>
    %23 = arith.addf %21, %22 : vector<1x128xf32>
    %c0_7 = arith.constant 0 : index
    %c0_8 = arith.constant 0 : index
    %24 = vector.load %arg3[%c0_7, %c0_8] : memref<1x128xf32, #tpu.memory_space<vmem>>, vector<1x128xf32>
    tpu.vector_store %arg3[%c0_7, %c0_8], %23 {strides = array<i32>} : memref<1x128xf32, #tpu.memory_space<vmem>>, vector<1x128xf32>,
    return
  }
  func.func @transform_0(%arg0: i32) -> (i32, i32) {
    %c0_i32 = arith.constant 0 : i32
    %c0_i32_0 = arith.constant 0 : i32
    return %c0_i32, %arg0 : i32, i32
  }
  func.func @transform_1(%arg0: i32) -> (i32, i32) {
    %c0_i32 = arith.constant 0 : i32
    %c0_i32_0 = arith.constant 0 : i32
    %c0_i32_1 = arith.constant 0 : i32
    return %c0_i32, %c0_i32_0 : i32, i32
  }
  func.func @transform_2(%arg0: i32) -> (i32, i32) {
    %c0_i32 = arith.constant 0 : i32
    %c0_i32_0 = arith.constant 0 : i32
    return %c0_i32, %arg0 : i32, i32
  }
}

</mosaic_0001>

<llo_original>
// kernel: tpu_custom_call.1
$region0: #{tpu_custom_call.1}
  #allocation0 [shape = 'u32[]', space=smem, size = 0x4, offset = 0x4, fixed_abs, tag = 'smem constant byte address 0x4 - core index']
  #allocation1 [shape = 'u32[144,128]{1,0:T(1,128)}', space=vmem, size = 0x12000, scoped, tag = 'internal scratch']
  %s0 = inlined_call_operand.hbm [shape: f32[2,128], index: 0, kind: input, shape index: {}]
  %s1 = inlined_call_operand.hbm [shape: f32[32,128], index: 1, kind: input, shape index: {}]
  %s2 = inlined_call_operand.hbm [shape: f32[1,128], index: 2, kind: output, shape index: {}]
  %s3 = sld [smem:[#allocation0]]
  $region26: #{tpu_custom_call.1} parent=0
    _
  %s5 = ssub.s32 1, %s3
  %s6 = scalar_select 0, %s5, %s3
  $region1: #{tpu_custom_call.1} parent=0
    #allocation2 [shape = 'u8[1024]{0}', space=vmem, size = 0x400, scoped, tag = 'input window, operand 0, single buffered']
    #allocation3 [shape = 's32[1]{0}', space=sflag, size = 0x4, scoped, tag = 'scoped memory for tpu_custom_call.1']
    #allocation4 [shape = 's32[1]{0}', space=sflag, size = 0x4, scoped, tag = 'scoped memory for tpu_custom_call.1']
    #allocation5 [shape = 'u8[16384]{0}', space=vmem, size = 0x4000, scoped, tag = 'input window, operand 1, single buffered']
    #allocation6 [shape = 's32[1]{0}', space=sflag, size = 0x4, scoped, tag = 'scoped memory for tpu_custom_call.1']
    #allocation7 [shape = 'u8[512]{0}', space=vmem, size = 0x400, scoped, tag = 'output window, operand 0, single buffered']
    %7 = vsyncpa [#allocation3], 0
    %8 = vsyncpa [#allocation6], 0
    %9 = vsyncpa [#allocation4], 0
    // Predicated region
    $region2: #{tpu_custom_call.1} parent=1 // pred_check
      _
    $region3: #{tpu_custom_call.1} parent=1 // pred_check_branch
      %11 = sbr.rel (0) target = $region5
    $region4: #{tpu_custom_call.1} parent=1 // pred_region
      %s13 = ssub.s32 32, 32
      %14 = vsyncadd [#allocation3], %s13
      %s16 = sshll.u32 [#allocation2], 4
      %s17 = int_to_ptr.vmem [resolvable:$true] %s16
      %19 = dma.hbm_to_vmem [thread:$0]  %s0, 32, %s17, [#allocation3]
    $region5: #{tpu_custom_call.1} parent=1 // pred_fallthru
      _
    // Predicated region
    $region6: #{tpu_custom_call.1} parent=1 // pred_check
      _
    $region7: #{tpu_custom_call.1} parent=1 // pred_check_branch
      %21 = sbr.rel (0) target = $region9
    $region8: #{tpu_custom_call.1} parent=1 // pred_region
      %s23 = ssub.s32 512, 512
      %24 = vsyncadd [#allocation6], %s23
      %s25 = sshll.u32 [#allocation5], 4
      %s26 = int_to_ptr.vmem [resolvable:$true] %s25
      %31 = dma.hbm_to_vmem [thread:$0]  %s1, 512, %s26, [#allocation6], 128, 128, 8
    $region9: #{tpu_custom_call.1} parent=1 // pred_fallthru
      _
    // Predicated region
    $region10: #{tpu_custom_call.1} parent=1 // pred_check
      _
    $region11: #{tpu_custom_call.1} parent=1 // pred_check_branch
      %33 = sbr.rel (0) target = $region13
    $region12: #{tpu_custom_call.1} parent=1 // pred_region
      %34 = dma.done [#allocation3], 32
    $region13: #{tpu_custom_call.1} parent=1 // pred_fallthru
      _
    // Predicated region
    $region14: #{tpu_custom_call.1} parent=1 // pred_check
      _
    $region15: #{tpu_custom_call.1} parent=1 // pred_check_branch
      %36 = sbr.rel (0) target = $region17
    $region16: #{tpu_custom_call.1} parent=1 // pred_region
      %37 = dma.done [#allocation6], 512
    $region17: #{tpu_custom_call.1} parent=1 // pred_fallthru
      _
    %v38 = vld [vmem:[#allocation5] sm:$0xff]
    %v39 = vld [vmem:[#allocation5 + $0x8] sm:$0xff]
    %v40 = vld [vmem:[#allocation5 + $0x10] sm:$0xff]
    %v41 = vld [vmem:[#allocation5 + $0x18] sm:$0xff]
    %v42 = vld [vmem:[#allocation2] sm:$0x3]
    %44 = vset.pattern.permute.xlu0 2
    %45 = vperm.xlu0 %44, %v38
    %v46 = vpop.permute.xlu0 %45
    %49 = vset.pattern.permute.xlu0 2
    %50 = vperm.xlu0 %49, %v39
    %v51 = vpop.permute.xlu0 %50
    %vm53 = vcmask 15360
    %v54 = vsel %vm53, %v38, 0
    %v56 = vsel %vm53, %v39, 0
    %vm58 = vcmask 1041408
    %v60 = vsel %vm58, %v42, 0
    %62 = vmatprep.subr.mxu0 0.0
    %63 = vmatpush1.msra.mxu0 %v60
    %64 = vmatprep.subr.mxu0 0.0
    %65 = vmatpush1.msra.mxu0 0.0
    %66 = vmatprep.subr.mxu0 0.0
    %67 = vmatpush1.msra.mxu0 0.0
    %68 = vmatprep.subr.mxu0 0.0
    %69 = vmatpush1.msra.mxu0 0.0
    %70 = vmatprep.subr.mxu0 0.0
    %71 = vmatpush1.msra.mxu0 0.0
    %72 = vmatprep.subr.mxu0 0.0
    %73 = vmatpush1.msra.mxu0 0.0
    %74 = vmatprep.subr.mxu0 0.0
    %75 = vmatpush1.msra.mxu0 0.0
    %76 = vmatprep.subr.mxu0 0.0
    %77 = vmatpush1.msra.mxu0 0.0
    %78 = vmatprep.subr.mxu0 0.0
    %79 = vmatpush1.msra.mxu0 0.0
    %80 = vmatprep.subr.mxu0 0.0
    %81 = vmatpush1.msra.mxu0 0.0
    %82 = vmatprep.subr.mxu0 0.0
    %83 = vmatpush1.msra.mxu0 0.0
    %84 = vmatprep.subr.mxu0 0.0
    %85 = vmatpush1.msra.mxu0 0.0
    %86 = vmatprep.subr.mxu0 0.0
    %87 = vmatpush1.msra.mxu0 0.0
    %88 = vmatprep.subr.mxu0 0.0
    %89 = vmatpush1.msra.mxu0 0.0
    %90 = vmatprep.subr.mxu0 0.0
    %91 = vmatpush1.msra.mxu0 0.0
    %92 = vmatprep.subr.mxu0 0.0
    %93 = vmatpush1.msra.mxu0 0.0
    %94 = vmatprep.subr.mxu0 0.0
    %95 = vmatpush1.msra.mxu0 0.0
    %96 = vmatprep.subr.mxu0 0.0
    %97 = vmatpush1.msra.mxu0 0.0
    %98 = vmatprep.subr.mxu0 0.0
    %99 = vmatpush1.msra.mxu0 0.0
    %100 = vmatprep.subr.mxu0 0.0
    %101 = vmatpush1.msra.mxu0 0.0
    %102 = vmatprep.subr.mxu0 0.0
    %103 = vmatpush1.msra.mxu0 0.0
    %104 = vmatprep.subr.mxu0 0.0
    %105 = vmatpush1.msra.mxu0 0.0
    %106 = vmatprep.subr.mxu0 0.0
    %107 = vmatpush1.msra.mxu0 0.0
    %108 = vmatprep.subr.mxu0 0.0
    %109 = vmatpush1.msra.mxu0 0.0
    %110 = vmatprep.subr.mxu0 0.0
    %111 = vmatpush1.msra.mxu0 0.0
    %112 = vmatprep.subr.mxu0 0.0
    %113 = vmatpush1.msra.mxu0 0.0
    %114 = vmatprep.subr.mxu0 0.0
    %115 = vmatpush1.msra.mxu0 0.0
    %116 = vmatprep.subr.mxu0 0.0
    %117 = vmatpush1.msra.mxu0 0.0
    %118 = vmatprep.subr.mxu0 0.0
    %119 = vmatpush1.msra.mxu0 0.0
    %120 = vmatprep.subr.mxu0 0.0
    %121 = vmatpush1.msra.mxu0 0.0
    %122 = vmatprep.subr.mxu0 0.0
    %123 = vmatpush1.msra.mxu0 0.0
    %124 = vmatprep.subr.mxu0 0.0
    %125 = vmatpush1.msra.mxu0 0.0
    %126 = vmatprep.mubr.f32.mxu0 0.0
    %127 = vmatmul.mubr.f32.gmra.mrb[0].mxu0 %v54
    %v128 = vpop.f32.mrb[0].mxu0
    %v129 = vadd.f32 %v46, %v128
    %v130 = vpop.f32.mrb[0].mxu0
    %131 = vmatprep.mubr.f32.mxu0 0.0
    %132 = vmatmul.mubr.f32.gmra.mrb[0].mxu0 %v56
    %v133 = vpop.f32.mrb[0].mxu0
    %v134 = vadd.f32 %v51, %v133
    %v135 = vpop.f32.mrb[0].mxu0
    %136 = vdwg.mxu0
    %v137 = vmax.f32 %v129, 0.0
    %v138 = vmax.f32 %v134, 0.0
    %140 = vset.pattern.permute.xlu0 16
    %141 = vperm.xlu0 %140, %v40
    %v142 = vpop.permute.xlu0 %141
    %vm144 = vcmask 130048
    %v145 = vsel %vm144, %v40, 0
    %147 = vmatprep.subr.mxu0 0.0
    %148 = vmatpush1.msra.mxu0 %v137
    %149 = vmatprep.subr.mxu0 0.0
    %150 = vmatpush1.msra.mxu0 %v138
    %151 = vmatprep.subr.mxu0 0.0
    %152 = vmatpush1.msra.mxu0 0.0
    %153 = vmatprep.subr.mxu0 0.0
    %154 = vmatpush1.msra.mxu0 0.0
    %155 = vmatprep.subr.mxu0 0.0
    %156 = vmatpush1.msra.mxu0 0.0
    %157 = vmatprep.subr.mxu0 0.0
    %158 = vmatpush1.msra.mxu0 0.0
    %159 = vmatprep.subr.mxu0 0.0
    %160 = vmatpush1.msra.mxu0 0.0
    %161 = vmatprep.subr.mxu0 0.0
    %162 = vmatpush1.msra.mxu0 0.0
    %163 = vmatprep.subr.mxu0 0.0
    %164 = vmatpush1.msra.mxu0 0.0
    %165 = vmatprep.subr.mxu0 0.0
    %166 = vmatpush1.msra.mxu0 0.0
    %167 = vmatprep.subr.mxu0 0.0
    %168 = vmatpush1.msra.mxu0 0.0
    %169 = vmatprep.subr.mxu0 0.0
    %170 = vmatpush1.msra.mxu0 0.0
    %171 = vmatprep.subr.mxu0 0.0
    %172 = vmatpush1.msra.mxu0 0.0
    %173 = vmatprep.subr.mxu0 0.0
    %174 = vmatpush1.msra.mxu0 0.0
    %175 = vmatprep.subr.mxu0 0.0
    %176 = vmatpush1.msra.mxu0 0.0
    %177 = vmatprep.subr.mxu0 0.0
    %178 = vmatpush1.msra.mxu0 0.0
    %179 = vmatprep.subr.mxu0 0.0
    %180 = vmatpush1.msra.mxu0 0.0
    %181 = vmatprep.subr.mxu0 0.0
    %182 = vmatpush1.msra.mxu0 0.0
    %183 = vmatprep.subr.mxu0 0.0
    %184 = vmatpush1.msra.mxu0 0.0
    %185 = vmatprep.subr.mxu0 0.0
    %186 = vmatpush1.msra.mxu0 0.0
    %187 = vmatprep.subr.mxu0 0.0
    %188 = vmatpush1.msra.mxu0 0.0
    %189 = vmatprep.subr.mxu0 0.0
    %190 = vmatpush1.msra.mxu0 0.0
    %191 = vmatprep.subr.mxu0 0.0
    %192 = vmatpush1.msra.mxu0 0.0
    %193 = vmatprep.subr.mxu0 0.0
    %194 = vmatpush1.msra.mxu0 0.0
    %195 = vmatprep.subr.mxu0 0.0
    %196 = vmatpush1.msra.mxu0 0.0
    %197 = vmatprep.subr.mxu0 0.0
    %198 = vmatpush1.msra.mxu0 0.0
    %199 = vmatprep.subr.mxu0 0.0
    %200 = vmatpush1.msra.mxu0 0.0
    %201 = vmatprep.subr.mxu0 0.0
    %202 = vmatpush1.msra.mxu0 0.0
    %203 = vmatprep.subr.mxu0 0.0
    %204 = vmatpush1.msra.mxu0 0.0
    %205 = vmatprep.subr.mxu0 0.0
    %206 = vmatpush1.msra.mxu0 0.0
    %207 = vmatprep.subr.mxu0 0.0
    %208 = vmatpush1.msra.mxu0 0.0
    %209 = vmatprep.subr.mxu0 0.0
    %210 = vmatpush1.msra.mxu0 0.0
    %211 = vmatprep.mubr.f32.mxu0 0.0
    %212 = vmatmul.mubr.f32.gmra.mrb[0].mxu0 %v145
    %v213 = vpop.f32.mrb[0].mxu0
    %v214 = vadd.f32 %v142, %v213
    %v215 = vpop.f32.mrb[0].mxu0
    %216 = vdwg.mxu0
    %v217 = vmax.f32 %v214, 0.0
    %219 = vset.pattern.permute.xlu0 0
    %220 = vperm.xlu0 %219, %v41
    %v221 = vpop.permute.xlu0 %220
    %v223 = vmul.f32 %v221, %v217
    %v224 = vrot.slane %v223, 4
    %v225 = vadd.f32 %v223, %v224
    %v226 = vrot.slane %v225, 2
    %v227 = vadd.f32 %v225, %v226
    %v228 = vrot.slane %v227, 1
    %v229 = vadd.f32 %v227, %v228
    %230 = vset.pattern.permute.xlu0 1
    %231 = vperm.xlu0 %230, %v41
    %v232 = vpop.permute.xlu0 %231
    %v234 = vadd.f32 %v229, %v232
    %235 = vst [vmem:[#allocation7] sm:$0x1] %v234
    // Predicated region
    $region18: #{tpu_custom_call.1} parent=1 // pred_check
      _
    $region19: #{tpu_custom_call.1} parent=1 // pred_check_branch
      %237 = sbr.rel (0) target = $region21
    $region20: #{tpu_custom_call.1} parent=1 // pred_region
      %s239 = ssub.s32 16, 16
      %240 = vsyncadd [#allocation4], %s239
      %s242 = sshll.u32 [#allocation7], 4
      %s243 = int_to_ptr.vmem [resolvable:$true] %s242
      %245 = dma.vmem_to_hbm [thread:$0]  %s243, 16, %s2, [#allocation4]
    $region21: #{tpu_custom_call.1} parent=1 // pred_fallthru
      _
    // Predicated region
    $region22: #{tpu_custom_call.1} parent=1 // pred_check
      _
    $region23: #{tpu_custom_call.1} parent=1 // pred_check_branch
      %247 = sbr.rel (0) target = $region25
    $region24: #{tpu_custom_call.1} parent=1 // pred_region
      %248 = dma.done [#allocation4], 16
    $region25: #{tpu_custom_call.1} parent=1 // pred_fallthru
      _
    %249 = vsyncpa [#allocation3], 1
    %250 = vsyncpa [#allocation6], 1
    %251 = vsyncpa [#allocation4], 1

</llo_original>
